<compile_context>
chip_gen: v5e
topology: v5e:2x2
jax: 0.10.0
libtpu: 0.0.40
codegen_flags: <defaults>
</compile_context>

<pallas_src>
import functools

import jax
import jax.numpy as jnp
from jax.experimental import pallas as pl
from jax.experimental.pallas import tpu as pltpu


def _round_up(v, m):
    return (v + m - 1) // m * m


# ----------------------------- Pallas kernel -------------------------------

def _fused_conv1x1_kernel(x_ref, w_ref, b_ref, o_ref):
    # x_ref: (1, Cin, TL) f32     -- x[n, :, tile], HW on the lane axis
    # w_ref: (Cout, Cin)  bf16    -- resident fused weights  W^T
    # b_ref: (Cout, 1)    f32     -- resident fused bias
    # o_ref: (1, Cout, TL) bf16
    x = x_ref[0].astype(jnp.bfloat16)                       # VPU cast, f32 HBM read
    y = jnp.dot(w_ref[...], x, preferred_element_type=jnp.float32)   # (Cout, TL) f32
    o_ref[0] = jnp.maximum(y + b_ref[...], 0.0).astype(o_ref.dtype)  # f32 epilogue


def fused_conv1x1_bias_relu(x3d, wt, b, *, tl=1024):
    """relu(wt @ x3d[n] + b) per batch row.

    x3d: (N, Cin, HW) f32, wt: (Cout, Cin), b: (Cout,).
    Returns bf16 (N, Cout, HW) -- i.e. the NCHW output with H*W flattened.
    """
    n, cin, hw = x3d.shape
    cout, cin2 = wt.shape
    assert cin == cin2, (cin, cin2)

    tl = min(tl, _round_up(hw, 128))          # lane-dense tiles, no over-allocation
    hwp = _round_up(hw, tl)
    xp = x3d if hwp == hw else jnp.pad(x3d, ((0, 0), (0, 0), (0, hwp - hw)))

    wt = wt.astype(jnp.bfloat16)              # tiny, resident in VMEM
    b2 = b.reshape(cout, 1).astype(jnp.float32)

    # Rough double-buffered per-step VMEM footprint; only raise the scoped
    # limit when production-sized shapes would exceed the default (v5e 16 MiB /
    # v6e+v7x 32 MiB).  Never triggers at the toy shapes below.
    vmem_est = (2 * _round_up(cin, 8) * tl * 4            # x tile (f32)
                + 2 * _round_up(cout, 16) * tl * 2        # out tile (bf16)
                + 2 * _round_up(cout, 16) * _round_up(cin, 128) * 2   # weights
                + 2 * _round_up(cout, 8) * 128 * 4)       # bias
    vmem_limit = min(int(vmem_est * 2), 96 << 20) if vmem_est > (12 << 20) else None

    cost = pl.CostEstimate(
        flops=2 * n * hwp * cin * cout,
        transcendentals=0,
        bytes_accessed=n * cin * hwp * 4 + cout * cin * 2 + cout * 4
                       + n * cout * hwp * 2)

    out = pl.pallas_call(
        _fused_conv1x1_kernel,
        out_shape=jax.ShapeDtypeStruct((n, cout, hwp), jnp.bfloat16),
        grid_spec=pltpu.PrefetchScalarGridSpec(
            num_scalar_prefetch=0,
            grid=(n, hwp // tl),
            in_specs=[
                pl.BlockSpec((1, cin, tl), lambda i, j: (i, 0, j)),   # x tile (pipelined)
                pl.BlockSpec((cout, cin), lambda i, j: (0, 0)),       # resident weights
                pl.BlockSpec((cout, 1), lambda i, j: (0, 0)),         # resident bias
            ],
            out_specs=pl.BlockSpec((1, cout, tl), lambda i, j: (i, 0, j)),
        ),
        compiler_params=pltpu.CompilerParams(
            dimension_semantics=("parallel", "parallel"),   # megacore on v7x
            vmem_limit_bytes=vmem_limit,
        ),
        cost_estimate=cost,
    )(xp, wt, b2)

    if hwp != hw:
        out = out[:, :, :hw]   # padded columns hold relu(b); never consumed
    return out


# ------------------------------ JAX glue -----------------------------------

def fold_bn(gamma, beta, mean, var, eps=1e-5):
    scale = gamma / jnp.sqrt(var + eps)
    bias = beta - mean * scale
    return scale, bias


@functools.partial(jax.jit, static_argnames=("tl",))
def bottleneck_forward(x_nchw, p, *, tl=1024):
    """out = relu(bn3(conv3(x)) + bn_ds(conv_ds(x))), computed NCHW-natively.

    The conv1/bn1/relu and conv2/bn2/relu branches of the reference forward
    are dead code (their results are overwritten before use) and are elided.
    """
    n, cin, h, w = x_nchw.shape
    x3d = x_nchw.reshape(n, cin, h * w)          # free view: NCHW == (N, C, HW)

    # Fold BN into the 1x1-conv weights and merge conv3 + downsample into one
    # matmul:  relu( (w3*s3 + wd*sd)^T @ x + (b3 + bd) ).
    w_fused = p["w3"] * p["s3"][None, :] + p["wd"] * p["sd"][None, :]   # (Cin, Cout)
    b_fused = p["b3"] + p["bd"]

    out3d = fused_conv1x1_bias_relu(x3d, w_fused.T, b_fused, tl=tl)     # bf16
    return out3d.reshape(n, w_fused.shape[1], h, w)                     # NCHW, no transpose


def init_params(key, inplanes, planes, expansion=4):
    """Deterministic synthetic parameters (PyTorch-layout weights converted)."""
    ks = jax.random.split(key, 7)

    def conv_w(k, cin, cout, ksz):
        # PyTorch conv weight layout (cout, cin, kh, kw) -> (kh*kw*cin, cout)
        w = 0.1 * jax.random.normal(k, (cout, cin, ksz, ksz), jnp.float32)
        return jnp.transpose(w, (2, 3, 1, 0)).reshape(ksz * ksz * cin, cout)

    def bn_params(k, c):
        k1, k2, k3, k4 = jax.random.split(k, 4)
        gamma = 1.0 + 0.1 * jax.random.normal(k1, (c,), jnp.float32)
        beta = 0.1 * jax.random.normal(k2, (c,), jnp.float32)
        mean = 0.1 * jax.random.normal(k3, (c,), jnp.float32)
        var = 0.5 + jnp.abs(jax.random.normal(k4, (c,), jnp.float32))
        return fold_bn(gamma, beta, mean, var)

    cexp = planes * expansion
    p = {}
    # conv1/bn1 and conv2/bn2 parameters exist on the module but are dead in
    # its forward pass; kept only for parameter-structure fidelity.
    p["w1"] = conv_w(ks[0], inplanes, planes, 1)
    p["s1"], p["b1"] = bn_params(ks[1], planes)
    p["w2"] = conv_w(ks[2], planes, planes, 3)
    p["s2"], p["b2"] = bn_params(ks[3], planes)
    # live path: conv3 + bn3 and downsample (1x1 conv + bn, stride=1)
    p["w3"] = conv_w(ks[4], planes, cexp, 1)            # conv3(x): inplanes == planes
    p["s3"], p["b3"] = bn_params(ks[5], cexp)
    kd1, kd2 = jax.random.split(ks[6])
    p["wd"] = conv_w(kd1, inplanes, cexp, 1)
    p["sd"], p["bd"] = bn_params(kd2, cexp)
    return p


def reference_forward(x_nchw, p):
    """Pure f32 JAX reference of the module's (live) forward path."""
    n, cin, h, w = x_nchw.shape
    x3d = x_nchw.reshape(n, cin, h * w)                                 # (N, Cin, HW)
    y3 = (jnp.einsum("kc,nkl->ncl", p["w3"], x3d) * p["s3"][None, :, None]
          + p["b3"][None, :, None])
    yd = (jnp.einsum("kc,nkl->ncl", p["wd"], x3d) * p["sd"][None, :, None]
          + p["bd"][None, :, None])
    return jnp.maximum(y3 + yd, 0.0).reshape(n, -1, h, w)


if __name__ == "__main__":
    # Small shapes: batch=2, inplanes=planes=4, spatial=16x16, stride=1,
    # downsample = 1x1 conv + BN mapping 4 -> 16 channels (NCHW input).
    key = jax.random.PRNGKey(0)
    kx, kp = jax.random.split(key)
    x = jax.random.normal(kx, (2, 4, 16, 16), jnp.float32)
    params = init_params(kp, inplanes=4, planes=4, expansion=4)

    # tl=128 -> HW=256 split into 2 lane tiles; grid = (2, 2) exercises both axes.
    out = jax.block_until_ready(bottleneck_forward(x, params, tl=128))
    ref = jax.block_until_ready(reference_forward(x, params))

    assert out.shape == (2, 16, 16, 16), out.shape
    # Kernel uses bf16 MXU operands + bf16 output; reference is pure f32.
    assert jnp.allclose(out.astype(jnp.float32), ref, atol=2e-2, rtol=2e-2), float(
        jnp.max(jnp.abs(out.astype(jnp.float32) - ref)))
    print("KERNEL_OK")
</pallas_src>

<mosaic_0001>
module attributes {stable_mosaic.version = 11 : i64} {
  func.func @_fused_conv1x1_kernel(%arg0: i32, %arg1: i32, %arg2: memref<1x4x128xf32, #tpu.memory_space<vmem>>, %arg3: memref<16x4xbf16, #tpu.memory_space<vmem>>, %arg4: memref<16x1xf32, #tpu.memory_space<vmem>>, %arg5: memref<1x16x128xbf16, #tpu.memory_space<vmem>>) attributes {dimension_semantics = [#tpu.dimension_semantics<parallel>, #tpu.dimension_semantics<parallel>], iteration_bounds = array<i64: 2, 2>, scalar_prefetch = 0 : i64, scratch_operands = 0 : i64, tpu.core_type = #tpu.core_type<tc>, window_params = [{transform_indices = @transform_0, window_bounds = array<i64: 1, 4, 128>}, {pipeline_mode = #tpu.pipeline_mode<synchronous>, transform_indices = @transform_1, window_bounds = array<i64: 16, 4>}, {pipeline_mode = #tpu.pipeline_mode<synchronous>, transform_indices = @transform_2, window_bounds = array<i64: 16, 1>}, {transform_indices = @transform_3, window_bounds = array<i64: 1, 16, 128>}]} {
    %c0 = arith.constant 0 : index
    %c0_0 = arith.constant 0 : index
    %c0_1 = arith.constant 0 : index
    %0 = vector.load %arg2[%c0, %c0_0, %c0_1] : memref<1x4x128xf32, #tpu.memory_space<vmem>>, vector<1x4x128xf32>
    %1 = vector.shape_cast %0 : vector<1x4x128xf32> to vector<4x128xf32>
    %2 = arith.truncf %1 : vector<4x128xf32> to vector<4x128xbf16>
    %c0_2 = arith.constant 0 : index
    %c0_3 = arith.constant 0 : index
    %3 = vector.load %arg3[%c0_2, %c0_3] : memref<16x4xbf16, #tpu.memory_space<vmem>>, vector<16x4xbf16>
    %cst = arith.constant dense<0.000000e+00> : vector<16x128xf32>
    %4 = tpu.matmul %3, %2, %cst {dimension_numbers = #tpu.dot_dimension_numbers<[1], [0], [0], [1], [0, 0, 1, 1], [], []>} : vector<16x4xbf16>, vector<4x128xbf16>, vector<16x128xf32> -> vector<16x128xf32>
    %c0_4 = arith.constant 0 : index
    %c0_5 = arith.constant 0 : index
    %5 = vector.load %arg4[%c0_4, %c0_5] : memref<16x1xf32, #tpu.memory_space<vmem>>, vector<16x1xf32>
    %6 = vector.broadcast %5 : vector<16x1xf32> to vector<16x128xf32>
    %7 = arith.addf %4, %6 : vector<16x128xf32>
    %cst_6 = arith.constant 0.000000e+00 : f32
    %8 = vector.broadcast %cst_6 : f32 to vector<16x128xf32>
    %9 = arith.maximumf %7, %8 : vector<16x128xf32>
    %10 = arith.truncf %9 : vector<16x128xf32> to vector<16x128xbf16>
    %c0_7 = arith.constant 0 : index
    %c0_8 = arith.constant 0 : index
    %c0_9 = arith.constant 0 : index
    %11 = vector.load %arg5[%c0_7, %c0_8, %c0_9] : memref<1x16x128xbf16, #tpu.memory_space<vmem>>, vector<1x16x128xbf16>
    %12 = vector.shape_cast %11 : vector<1x16x128xbf16> to vector<16x128xbf16>
    %13 = vector.shape_cast %10 : vector<16x128xbf16> to vector<1x16x128xbf16>
    tpu.vector_store %arg5[%c0_7, %c0_8, %c0_9], %13 {strides = array<i32>} : memref<1x16x128xbf16, #tpu.memory_space<vmem>>, vector<1x16x128xbf16>,
    return
  }
  func.func @transform_0(%arg0: i32, %arg1: i32) -> (i32, i32, i32) {
    %c0_i32 = arith.constant 0 : i32
    %c0_i32_0 = arith.constant 0 : i32
    return %arg0, %c0_i32, %arg1 : i32, i32, i32
  }
  func.func @transform_1(%arg0: i32, %arg1: i32) -> (i32, i32) {
    %c0_i32 = arith.constant 0 : i32
    %c0_i32_0 = arith.constant 0 : i32
    %c0_i32_1 = arith.constant 0 : i32
    return %c0_i32, %c0_i32_0 : i32, i32
  }
  func.func @transform_2(%arg0: i32, %arg1: i32) -> (i32, i32) {
    %c0_i32 = arith.constant 0 : i32
    %c0_i32_0 = arith.constant 0 : i32
    %c0_i32_1 = arith.constant 0 : i32
    return %c0_i32, %c0_i32_0 : i32, i32
  }
  func.func @transform_3(%arg0: i32, %arg1: i32) -> (i32, i32, i32) {
    %c0_i32 = arith.constant 0 : i32
    %c0_i32_0 = arith.constant 0 : i32
    return %arg0, %c0_i32, %arg1 : i32, i32, i32
  }
}

</mosaic_0001>

<llo_original>
// kernel: bottleneck_forward.1
$region0: #{bottleneck_forward.1}
  #allocation0 [shape = 'u32[]', space=smem, size = 0x4, offset = 0x4, fixed_abs, tag = 'smem constant byte address 0x4 - core index']
  #allocation1 [shape = 'u32[72,128]{1,0:T(1,128)}', space=vmem, size = 0x9000, scoped, tag = 'internal scratch']
  %s0 = inlined_call_operand.vmem [shape: f32[2,4,256], index: 0, kind: input, shape index: {}]
  %s1 = inlined_call_operand.vmem [shape: bf16[16,4], index: 1, kind: input, shape index: {}]
  %s2 = inlined_call_operand.vmem [shape: f32[16,1], index: 2, kind: input, shape index: {}]
  %s3 = inlined_call_operand.vmem [shape: bf16[2,16,256], index: 3, kind: output, shape index: {}]
  %s4 = sld [smem:[#allocation0]]
  $region82: #{bottleneck_forward.1} parent=0
    _
  %s6 = ssub.s32 1, %s4
  %s7 = scalar_select 0, %s6, %s4
  $region1: #{bottleneck_forward.1} parent=0
    #allocation2 [shape = 'u8[8192]{0}', space=vmem, size = 0x2000, scoped, tag = 'output window, operand 0']
    loop: start=0, step=1, limit=6
    $region2: #{bottleneck_forward.1} parent=1 // loop_pre_header
      _
    $region3: #{bottleneck_forward.1} parent=1 // loop_header
      %s9 = sphi 0, %s13
      %p10 = scmp.ge.s32.totalorder %s9, 6
      %s16 = sphi 0, %s28
      %s17 = sphi 0, %s24
      %s18 = sphi 0, %s16
      %s19 = sphi 0, %s17
      %s20 = sphi 0, %s18
      %s21 = sphi 0, %s19
      %s33 = sphi 0, %s35
      %s36 = sphi 0, %s33
      %s37 = sphi 0, %s36
      %s53 = sphi 0, %s37
      %s57 = sphi 0, %s57
      %s59 = sphi 0, %s57
      %s60 = sphi 0, %s59
      %s74 = sphi 0, %s60
      %s78 = sphi 0, %s78
      %s80 = sphi 0, %s78
      %s81 = sphi 0, %s80
      %s95 = sphi 0, %s81
      %s103 = sphi 0, %s105
      %s106 = sphi 0, %s103
      %s107 = sphi 0, %s106
      %s123 = sphi 0, %s107
    $region4: #{bottleneck_forward.1} parent=1 // loop_header_branch
      %12 = sbr.rel (%p10) target = $region8
    $region5: #{bottleneck_forward.1} parent=1 // loop_body
      %s14 = ssub.s32 %s9, 1
      %s15 = ssub.s32 %s9, 2
      %s22 = sadd.s32 1, %s17
      %p23 = scmp.ge.s32.totalorder %s22, 2
      %s24 = scalar_select %p23, 0, %s22
      %s25 = sadd.s32 1, %s16
      %s26 = scalar_select %p23, %s25, %s16
      %p27 = scmp.ge.s32.totalorder %s26, 2
      %s28 = scalar_select %p27, 0, %s26
      %s29 = ssub.s32 %s16, %s28
      %s30 = ssub.s32 %s17, %s24
      %s31 = sor.u32 %s29, %s30
      %p32 = scmp.eq.s32.totalorder %s31, 0
      %s34 = sadd.s32 %s33, 1
      %s35 = scalar_select %p32, %s33, %s34
      %p38 = pneg %p32
      %p39 = scmp.eq.s32.totalorder %s9, 3
      %p40 = por %p38, %p39
      %p41 = scmp.ne.s32.totalorder %s33, %s36
      %p42 = scmp.eq.s32.totalorder %s9, 0
      %p43 = por %p41, %p42
      %p44 = scmp.ne.s32.totalorder %s33, %s36
      %p45 = scmp.eq.s32.totalorder %s14, 3
      %p46 = por %p44, %p45
      %p47 = scmp.ne.s32.totalorder %s36, %s37
      %p48 = scmp.eq.s32.totalorder %s14, 0
      %p49 = por %p47, %p48
      %p50 = scmp.ne.s32.totalorder %s36, %s37
      %p51 = scmp.eq.s32.totalorder %s15, 3
      %p52 = por %p50, %p51
      %p54 = scmp.ne.s32.totalorder %s37, %s53
      %p55 = scmp.eq.s32.totalorder %s15, 0
      %p56 = por %p54, %p55
      %s58 = sadd.s32 %s57, 1
      %p61 = scmp.eq.s32.totalorder %s9, 3
      %p62 = scmp.ne.s32.totalorder %s57, %s59
      %p63 = scmp.eq.s32.totalorder %s9, 0
      %p64 = por %p62, %p63
      %p65 = scmp.ne.s32.totalorder %s57, %s59
      %p66 = scmp.eq.s32.totalorder %s14, 3
      %p67 = por %p65, %p66
      %p68 = scmp.ne.s32.totalorder %s59, %s60
      %p69 = scmp.eq.s32.totalorder %s14, 0
      %p70 = por %p68, %p69
      %p71 = scmp.ne.s32.totalorder %s59, %s60
      %p72 = scmp.eq.s32.totalorder %s15, 3
      %p73 = por %p71, %p72
      %p75 = scmp.ne.s32.totalorder %s60, %s74
      %p76 = scmp.eq.s32.totalorder %s15, 0
      %p77 = por %p75, %p76
      %s79 = sadd.s32 %s78, 1
      %p82 = scmp.eq.s32.totalorder %s9, 3
      %p83 = scmp.ne.s32.totalorder %s78, %s80
      %p84 = scmp.eq.s32.totalorder %s9, 0
      %p85 = por %p83, %p84
      %p86 = scmp.ne.s32.totalorder %s78, %s80
      %p87 = scmp.eq.s32.totalorder %s14, 3
      %p88 = por %p86, %p87
      %p89 = scmp.ne.s32.totalorder %s80, %s81
      %p90 = scmp.eq.s32.totalorder %s14, 0
      %p91 = por %p89, %p90
      %p92 = scmp.ne.s32.totalorder %s80, %s81
      %p93 = scmp.eq.s32.totalorder %s15, 3
      %p94 = por %p92, %p93
      %p96 = scmp.ne.s32.totalorder %s81, %s95
      %p97 = scmp.eq.s32.totalorder %s15, 0
      %p98 = por %p96, %p97
      %s99 = ssub.s32 %s16, %s28
      %s100 = ssub.s32 %s17, %s24
      %s101 = sor.u32 %s99, %s100
      %p102 = scmp.eq.s32.totalorder %s101, 0
      %s104 = sadd.s32 %s103, 1
      %s105 = scalar_select %p102, %s103, %s104
      %p108 = pneg %p102
      %p109 = scmp.eq.s32.totalorder %s9, 3
      %p110 = por %p108, %p109
      %p111 = scmp.ne.s32.totalorder %s103, %s106
      %p112 = scmp.eq.s32.totalorder %s9, 0
      %p113 = por %p111, %p112
      %p114 = scmp.ne.s32.totalorder %s103, %s106
      %p115 = scmp.eq.s32.totalorder %s14, 3
      %p116 = por %p114, %p115
      %p117 = scmp.ne.s32.totalorder %s106, %s107
      %p118 = scmp.eq.s32.totalorder %s14, 0
      %p119 = por %p117, %p118
      %p120 = scmp.ne.s32.totalorder %s106, %s107
      %p121 = scmp.eq.s32.totalorder %s15, 3
      %p122 = por %p120, %p121
      %p124 = scmp.ne.s32.totalorder %s107, %s123
      %p125 = scmp.eq.s32.totalorder %s15, 0
      %p126 = por %p124, %p125
      %p127 = scmp.le.s32.totalorder 1, %s9
      %p128 = scmp.lt.s32.totalorder %s9, 5
      %p129 = pnand %p127, %p128
      %p130 = pneg %p129
      // Predicated region
      $region9: #{bottleneck_forward.1} parent=5 // pred_check
        _
      $region10: #{bottleneck_forward.1} parent=5 // pred_check_branch
        %132 = sbr.rel (%p129) target = $region12
      $region11: #{bottleneck_forward.1} parent=5 // pred_region
        %s133 = ssub.s32 %s9, 1
        // Predicated region
        $region13: #{bottleneck_forward.1} parent=11 // pred_check
          %p134 = pneg %p70
        $region14: #{bottleneck_forward.1} parent=11 // pred_check_branch
          %136 = sbr.rel (%p134) target = $region16
        $region15: #{bottleneck_forward.1} parent=11 // pred_region
          _
        $region16: #{bottleneck_forward.1} parent=11 // pred_fallthru
          _
        // Predicated region
        $region17: #{bottleneck_forward.1} parent=11 // pred_check
          %p137 = pneg %p91
        $region18: #{bottleneck_forward.1} parent=11 // pred_check_branch
          %139 = sbr.rel (%p137) target = $region20
        $region19: #{bottleneck_forward.1} parent=11 // pred_region
          _
        $region20: #{bottleneck_forward.1} parent=11 // pred_fallthru
          _
      $region12: #{bottleneck_forward.1} parent=5 // pred_fallthru
        _
      %p140 = scmp.lt.s32.totalorder %s9, 4
      // Predicated region
      $region21: #{bottleneck_forward.1} parent=5 // pred_check
        %p141 = pneg %p140
      $region22: #{bottleneck_forward.1} parent=5 // pred_check_branch
        %143 = sbr.rel (%p141) target = $region24
      $region23: #{bottleneck_forward.1} parent=5 // pred_region
        // Predicated region
        $region25: #{bottleneck_forward.1} parent=23 // pred_check
          %p144 = pneg %p43
        $region26: #{bottleneck_forward.1} parent=23 // pred_check_branch
          %146 = sbr.rel (%p144) target = $region28
        $region27: #{bottleneck_forward.1} parent=23 // pred_region
          %p147 = scmp.lt.s32.totalorder %s16, 1
          %s148 = scalar_select %p147, %s16, 1
          %p149 = scmp.lt.s32.totalorder %s17, 1
          %s150 = scalar_select %p149, %s17, 1
          %s151 = smul.addr %s148, 2
          %s152 = sadd.s32 %s150, %s151
          %s153 = smul.addr %s152, 4
          %s154 = scalar_lea.vmem %s0, %s153
        $region28: #{bottleneck_forward.1} parent=23 // pred_fallthru
          _
      $region24: #{bottleneck_forward.1} parent=5 // pred_fallthru
        _
      %p155 = scmp.le.s32.totalorder 1, %s9
      %p156 = scmp.lt.s32.totalorder %s9, 5
      %p157 = pnand %p155, %p156
      %p158 = pneg %p157
      // Predicated region
      $region29: #{bottleneck_forward.1} parent=5 // pred_check
        _
      $region30: #{bottleneck_forward.1} parent=5 // pred_check_branch
        %160 = sbr.rel (%p157) target = $region32
      $region31: #{bottleneck_forward.1} parent=5 // pred_region
        %s161 = ssub.s32 %s9, 1
        %p162 = scmp.lt.s32.totalorder %s18, 1
        %s163 = scalar_select %p162, %s18, 1
        %p164 = scmp.lt.s32.totalorder %s19, 1
        %s165 = scalar_select %p164, %s19, 1
        %s166 = smul.addr %s163, 2
        %s167 = sadd.s32 %s165, %s166
        %s168 = smul.addr %s167, 4
        %s169 = scalar_lea.vmem %s0, %s168
        %p170 = pneg %p49
        %p171 = pneg %p46
        %p172 = pneg %p70
        %p173 = pneg %p67
        %p174 = pneg %p91
        %p175 = pneg %p88
        %p176 = pneg %p119
        %p177 = pneg %p116
        %s178 = sand.u32 %s106, 1
        %s179 = sand.u32 %s106, 1
        %s180 = smul.addr %s179, 8
        %s181 = scalar_lea.vmem [#allocation2], %s180
        %p182 = scmp.lt.s32.totalorder %s18, 1
        %s183 = scalar_select %p182, %s18, 1
        %p184 = scmp.lt.s32.totalorder %s19, 1
        %s185 = scalar_select %p184, %s19, 1
        %s186 = smul.addr %s183, 2
        %s187 = sadd.s32 %s185, %s186
        %s188 = smul.addr %s187, 4
        %s189 = scalar_lea.vmem %s0, %s188
        %v191 = vld [vmem:[%s189] sm:$0xf]
        %v192 = vpack.c.bf16 %v191, %v191
        %v193 = vld [vmem:[%s1] sm:$0xf]
        %v194 = vld [vmem:[%s1 + $0x4] sm:$0xf]
        %v195 = vld [vmem:[%s2] sm:$0xff]
        %v196 = vld [vmem:[%s2 + $0x8] sm:$0xff]
        %198 = vset.pattern.permute.xlu0 0
        %199 = vperm.xlu0 %198, %v195
        %v200 = vpop.permute.xlu0 %199
        %203 = vset.pattern.permute.xlu0 0
        %204 = vperm.xlu0 %203, %v196
        %v205 = vpop.permute.xlu0 %204
        %v209 = vunpack.c.l.b16 %v193
        %v210 = vunpack.c.l.b16 %v194
        %v211 = vpack.c.b16 %v210, %v209
        %vm212 = vcmask 31744
        %v214 = vsel %vm212, %v211, 0
        %vm216 = vcmask 1041408
        %v218 = vsel %vm216, %v192, 0
        %220 = vmatpush.bf16.msra.mxu0 0
        %221 = vmatpush.bf16.msra.mxu0 0
        %222 = vmatpush.bf16.msra.mxu0 0
        %223 = vmatpush.bf16.msra.mxu0 0
        %224 = vmatpush.bf16.msra.mxu0 0
        %225 = vmatpush.bf16.msra.mxu0 0
        %226 = vmatpush.bf16.msra.mxu0 0
        %227 = vmatpush.bf16.msra.mxu0 %v218
        %228 = vmatmul.bf16.gmra.mxu0 %v214
        %v229 = vpop.f32.mrf.mxu0
        %v230 = vadd.f32 %v200, %v229
        %v231 = vpop.f32.mrf.mxu0
        %v232 = vadd.f32 %v205, %v231
        %233 = vdwg.mxu0
        %v234 = vmax.f32 %v230, 0.0
        %v235 = vmax.f32 %v232, 0.0
        %v236 = vpack.c.bf16 %v234, %v234
        %v237 = vpack.c.bf16 %v235, %v235
        %238 = vst [vmem:[%s181] sm:$0xf] %v236
        %239 = vst [vmem:[%s181 + $0x4] sm:$0xf] %v237
        %s240 = sand.u32 %s106, 1
        %s241 = sand.u32 %s106, 1
        %s242 = smul.addr %s241, 8
        %s243 = scalar_lea.vmem [#allocation2], %s242
        // Predicated region
        $region33: #{bottleneck_forward.1} parent=31 // pred_check
          %p244 = pneg %p116
        $region34: #{bottleneck_forward.1} parent=31 // pred_check_branch
          %246 = sbr.rel (%p244) target = $region36
        $region35: #{bottleneck_forward.1} parent=31 // pred_region
          %s247 = smul.addr %s18, 4
          %s248 = sadd.s32 %s19, %s247
          %s249 = smul.addr %s248, 4
          %s250 = scalar_lea.vmem %s3, %s249
          // Predicated region
          $region37: #{bottleneck_forward.1} parent=35 // pred_check
            _
          $region38: #{bottleneck_forward.1} parent=35 // pred_check_branch
            %252 = sbr.rel (0) target = $region40
          $region39: #{bottleneck_forward.1} parent=35 // pred_region
            // Predicated region
            $region41: #{bottleneck_forward.1} parent=39 // pred_check
              _
            $region42: #{bottleneck_forward.1} parent=39 // pred_check_branch
              %254 = sbr.rel target = $region44
            $region43: #{bottleneck_forward.1} parent=39 // pred_region
              // Predicated region
              $region56: #{bottleneck_forward.1} parent=43 // pred_check
                _
              $region57: #{bottleneck_forward.1} parent=43 // pred_check_branch
                %272 = sbr.rel (0) target = $region59
              $region58: #{bottleneck_forward.1} parent=43 // pred_region
                loop: start=0, step=1, limit=1
                $region60: #{bottleneck_forward.1} parent=58 // loop_pre_header
                  _
                $region61: #{bottleneck_forward.1} parent=58 // loop_header
                  %s274 = sphi 0, %s278
                  %p275 = scmp.ge.s32.totalorder %s274, 1
                  %s279 = sphi %s243, %s243
                  %s280 = sphi %s250, %s250
                $region62: #{bottleneck_forward.1} parent=58 // loop_header_branch
                  %277 = sbr.rel (%p275) target = $region66
                $region63: #{bottleneck_forward.1} parent=58 // loop_body
                  _
                $region64: #{bottleneck_forward.1} parent=58 // loop_footer
                  %s278 = sadd.s32 1, %s274
                $region65: #{bottleneck_forward.1} parent=58 // loop_footer_branch
                  %273 = sbr.rel target = $region61
                $region66: #{bottleneck_forward.1} parent=58 // loop_exit
                  _
                %s282 = ssub.s32 16, 1
                loop: start=0, step=1, limit=1
                $region67: #{bottleneck_forward.1} parent=58 // loop_pre_header
                  _
                $region68: #{bottleneck_forward.1} parent=58 // loop_header
                  %s284 = sphi 0, %s288
                  %p285 = scmp.ge.s32.totalorder %s284, 1
                  %s289 = sphi %s243, %s243
                  %s290 = sphi %s250, %s250
                $region69: #{bottleneck_forward.1} parent=58 // loop_header_branch
                  %287 = sbr.rel (%p285) target = $region73
                $region70: #{bottleneck_forward.1} parent=58 // loop_body
                  %v291 = vld [vmem:[%s289] sm:%s282]
                  %292 = vst [vmem:[%s290] sm:%s282] %v291
                  %v293 = vld [vmem:[%s289 + $0x4] sm:%s282]
                  %294 = vst [vmem:[%s290 + $0x8] sm:%s282] %v293
                $region71: #{bottleneck_forward.1} parent=58 // loop_footer
                  %s288 = sadd.s32 1, %s284
                $region72: #{bottleneck_forward.1} parent=58 // loop_footer_branch
                  %283 = sbr.rel target = $region68
                $region73: #{bottleneck_forward.1} parent=58 // loop_exit
                  _
              $region59: #{bottleneck_forward.1} parent=43 // pred_fallthru
                _
            $region44: #{bottleneck_forward.1} parent=39 // pred_fallthru
              _
            // Predicated region
            $region45: #{bottleneck_forward.1} parent=39 // pred_check
              _
            $region46: #{bottleneck_forward.1} parent=39 // pred_check_branch
              %256 = sbr.rel (0) target = $region48
            $region47: #{bottleneck_forward.1} parent=39 // pred_region
              %s258 = ssub.s32 16, 1
              loop: start=0, step=1, limit=1
              $region49: #{bottleneck_forward.1} parent=47 // loop_pre_header
                _
              $region50: #{bottleneck_forward.1} parent=47 // loop_header
                %s260 = sphi 0, %s264
                %p261 = scmp.ge.s32.totalorder %s260, 1
                %s265 = sphi %s243, %s243
                %s266 = sphi %s250, %s250
              $region51: #{bottleneck_forward.1} parent=47 // loop_header_branch
                %263 = sbr.rel (%p261) target = $region55
              $region52: #{bottleneck_forward.1} parent=47 // loop_body
                %v267 = vld [vmem:[%s265] sm:%s258]
                %268 = vst [vmem:[%s266] sm:%s258] %v267
                %v269 = vld [vmem:[%s265 + $0x4] sm:%s258]
                %270 = vst [vmem:[%s266 + $0x8] sm:%s258] %v269
              $region53: #{bottleneck_forward.1} parent=47 // loop_footer
                %s264 = sadd.s32 1, %s260
              $region54: #{bottleneck_forward.1} parent=47 // loop_footer_branch
                %259 = sbr.rel target = $region50
              $region55: #{bottleneck_forward.1} parent=47 // loop_exit
                _
            $region48: #{bottleneck_forward.1} parent=39 // pred_fallthru
              _
          $region40: #{bottleneck_forward.1} parent=35 // pred_fallthru
            _
          %295 = vnop
        $region36: #{bottleneck_forward.1} parent=31 // pred_fallthru
          _
      $region32: #{bottleneck_forward.1} parent=5 // pred_fallthru
        _
      %p296 = scmp.le.s32.totalorder 2, %s9
      // Predicated region
      $region74: #{bottleneck_forward.1} parent=5 // pred_check
        %p297 = pneg %p296
      $region75: #{bottleneck_forward.1} parent=5 // pred_check_branch
        %299 = sbr.rel (%p297) target = $region77
      $region76: #{bottleneck_forward.1} parent=5 // pred_region
        %s300 = ssub.s32 %s9, 2
        // Predicated region
        $region78: #{bottleneck_forward.1} parent=76 // pred_check
          %p301 = pneg %p122
        $region79: #{bottleneck_forward.1} parent=76 // pred_check_branch
          %303 = sbr.rel (%p301) target = $region81
        $region80: #{bottleneck_forward.1} parent=76 // pred_region
          %s304 = sand.u32 %s107, 1
          %s305 = sand.u32 %s107, 1
          %s306 = smul.addr %s305, 8
          %s307 = scalar_lea.vmem [#allocation2], %s306
        $region81: #{bottleneck_forward.1} parent=76 // pred_fallthru
          _
      $region77: #{bottleneck_forward.1} parent=5 // pred_fallthru
        _
    $region6: #{bottleneck_forward.1} parent=1 // loop_footer
      %s13 = sadd.s32 1, %s9
    $region7: #{bottleneck_forward.1} parent=1 // loop_footer_branch
      %8 = sbr.rel target = $region3
    $region8: #{bottleneck_forward.1} parent=1 // loop_exit
      _

</llo_original>
